<compile_context>
chip_gen: v6e
topology: v6e:2x2x1
jax: 0.10.0
libtpu: 0.0.40
codegen_flags: <defaults>
</compile_context>

<pallas_src>
import functools

import jax
import jax.numpy as jnp
from jax.experimental import pallas as pl
from jax.experimental.pallas import tpu as pltpu


def _eca_kernel(w_ref, x_ref, o_ref, *, C):
    rt = x_ref.shape[0]

    # Global average pool over the spatial (lane) axis; accumulate in f32.
    # The taps already carry the 1/(H*W) factor, so a plain sum suffices.
    pooled = jnp.sum(x_ref[...], axis=1, dtype=jnp.float32, keepdims=True)  # (rt, 1)

    # 3-tap conv along channels via XLU rolls. rt is a multiple of C, so row 0
    # of every block is channel 0 and the last row is channel C-1; the
    # circular-wrap contributions are therefore zeroed by the boundary masks.
    c_idx = jax.lax.broadcasted_iota(jnp.int32, (rt, 1), 0) % C
    wl = jnp.where(c_idx == 0, 0.0, w_ref[0])          # left-neighbour tap, masked
    wr = jnp.where(c_idx == C - 1, 0.0, w_ref[2])      # right-neighbour tap, masked
    p_left = pltpu.roll(pooled, 1, axis=0)             # pooled[r - 1]
    p_right = pltpu.roll(pooled, rt - 1, axis=0)       # pooled[r + 1] (== roll by -1)

    y = w_ref[1] * pooled + wl * p_left + wr * p_right
    scale = jax.nn.sigmoid(y)                          # (rt, 1), f32 on the EUP

    # Rescale in f32, single cast on the product (lane-dense store).
    o_ref[...] = (x_ref[...].astype(jnp.float32) * scale).astype(o_ref.dtype)


def _vmem_budget_bytes():
    """Best-effort per-TensorCore VMEM capacity."""
    cap = 64 * 1024 * 1024  # conservative default (v7x per-TC VMEM)
    try:
        info = pltpu.get_tpu_info()
        c = getattr(info, "vmem_capacity_bytes", None)
        if c:
            cap = int(c)
        # On v7x the 128 MiB figure (if reported) is per-chip across 2 TCs.
        ver = getattr(info, "chip_version", None)
        if ver is not None and "7" in str(ver) and cap > 64 * 1024 * 1024:
            cap = cap // 2
    except Exception:
        pass
    return cap


def channel_attention_block(x, conv_weight):
    """x: (B, C, H, W); conv_weight: taps of Conv1d(1, 1, 3, padding=1, bias=False)."""
    B, C, H, W = x.shape
    HW = H * W
    itemsize = jnp.dtype(x.dtype).itemsize
    HWp = ((HW + 127) // 128) * 128               # lane-padded width (VMEM accounting only)

    x2 = x.reshape(B * C, HW)                     # no pad, no extra HBM pass

    # dtype-aware sublane packing requirement for the row axis of a block
    sub = {4: 8, 2: 16, 1: 32}.get(itemsize, 8)

    cap = _vmem_budget_bytes()
    per_buffer_budget = (cap * 3) // 16           # ~75% of VMEM over 4 pipeline buffers
    target_small = 4 * 1024 * 1024                # streaming hits HBM roofline well below this

    def tile_bytes(bt):
        return bt * C * HWp * itemsize

    # Layout-valid candidates: bt divides B and the row count is sublane-aligned
    # (or the block covers the whole row axis, which bypasses the constraint).
    divisible = [bt for bt in range(1, B + 1)
                 if B % bt == 0 and ((bt * C) % sub == 0 or bt == B)]
    max_tiles = max(B // bt for bt in divisible)

    def score(bt):
        nt = B // bt
        bb = tile_bytes(bt)
        fits = bb <= per_buffer_budget            # double-buffered in + out fit VMEM
        enough = nt >= min(8, max_tiles)          # keep the DMA pipeline busy
        small = bb <= target_small                # don't burn VMEM headroom for nothing
        even = (nt % 2 == 0)                      # split evenly across v7x's two TCs
        size_pref = bb if small else -bb          # largest small block, else smallest block
        return (fits, enough, small, even, size_pref)

    bt = max(divisible, key=score)
    # TODO(synk): if even a single image exceeds the VMEM budget, tile the
    # channel axis with a 1-row halo (or a pool-then-rescale two-pass) instead
    # of accepting the budget overrun that bt=1 implies.
    rt = bt * C
    num_tiles = (B * C) // rt
    block_bytes = tile_bytes(bt)
    vmem_limit = int(min(cap, max(32 * 1024 * 1024, 4 * block_bytes + (2 << 20))))

    # Fold the 1/(H*W) mean factor into the conv taps host-side.
    w3 = conv_weight.reshape(3).astype(jnp.float32) / float(HW)

    kernel = functools.partial(_eca_kernel, C=C)
    cost = pl.CostEstimate(
        flops=int(3 * B * C * HW),                # pool sum + broadcast rescale
        transcendentals=int(B * C),               # one sigmoid per channel
        bytes_accessed=int(2 * B * C * HW * itemsize),
    )

    out2 = pl.pallas_call(
        kernel,
        out_shape=jax.ShapeDtypeStruct((B * C, HW), x.dtype),
        grid=(num_tiles,),
        in_specs=[
            pl.BlockSpec(memory_space=pltpu.MemorySpace.SMEM),   # 3 conv taps
            pl.BlockSpec((rt, HW), lambda i: (i, 0)),            # x tile (full-width block)
        ],
        out_specs=pl.BlockSpec((rt, HW), lambda i: (i, 0)),
        compiler_params=pltpu.CompilerParams(
            dimension_semantics=("parallel",),
            vmem_limit_bytes=vmem_limit,
        ),
        cost_estimate=cost,
    )(w3, x2)

    return out2.reshape(B, C, H, W)


def _reference(x, conv_weight):
    # Pure-JAX reference mirroring the PyTorch semantics.
    pooled = jnp.mean(x, axis=(2, 3))                       # (B, C)
    p = jnp.pad(pooled, ((0, 0), (1, 1)))                   # zero-pad channels
    w = conv_weight.reshape(3)
    y = w[0] * p[:, :-2] + w[1] * p[:, 1:-1] + w[2] * p[:, 2:]
    scale = jax.nn.sigmoid(y)[:, :, None, None]
    return x * scale


if __name__ == "__main__":
    key = jax.random.PRNGKey(0)
    kx, kw = jax.random.split(key)

    B, C, H, W = 2, 4, 16, 16
    x = jax.random.normal(kx, (B, C, H, W), dtype=jnp.float32)
    # Deterministic init of Conv1d(1, 1, 3, bias=False) weight, (1,1,3) -> (3,)
    conv_weight = jax.random.normal(kw, (3,), dtype=jnp.float32) * 0.5

    out = channel_attention_block(x, conv_weight)
    out = jax.block_until_ready(out)

    ref = _reference(x, conv_weight)
    assert out.shape == (B, C, H, W)
    assert jnp.allclose(out, ref, atol=1e-5, rtol=1e-5), "mismatch vs reference"

    print("KERNEL_OK")
</pallas_src>

<mosaic_0001>
module attributes {stable_mosaic.version = 11 : i64} {
  func.func @_eca_kernel(%arg0: i32, %arg1: memref<3xf32, #tpu.memory_space<smem>>, %arg2: memref<8x256xf32, #tpu.memory_space<vmem>>, %arg3: memref<8x256xf32, #tpu.memory_space<vmem>>) attributes {dimension_semantics = [#tpu.dimension_semantics<parallel>], iteration_bounds = array<i64: 1>, scalar_prefetch = 0 : i64, scratch_operands = 0 : i64, tpu.core_type = #tpu.core_type<tc>, window_params = [{transform_indices = @transform_0, window_bounds = array<i64: 3>}, {transform_indices = @transform_1, window_bounds = array<i64: 8, 256>}, {transform_indices = @transform_2, window_bounds = array<i64: 8, 256>}]} {
    %c0 = arith.constant 0 : index
    %c0_0 = arith.constant 0 : index
    %0 = vector.load %arg2[%c0, %c0_0] : memref<8x256xf32, #tpu.memory_space<vmem>>, vector<8x256xf32>
    %cst = arith.constant dense<0.000000e+00> : vector<8xf32>
    %1 = vector.multi_reduction <add>, %0, %cst [1] : vector<8x256xf32> to vector<8xf32>
    %2 = vector.shape_cast %1 : vector<8xf32> to vector<8x1xf32>
    %3 = tpu.iota {dimensions = array<i32: 0>} : vector<8x1xi32>
    %c4_i32 = arith.constant 4 : i32
    %c0_i32 = arith.constant 0 : i32
    %4 = arith.cmpi eq, %c4_i32, %c0_i32 : i32
    %c1_i32 = arith.constant 1 : i32
    %5 = arith.select %4, %c1_i32, %c4_i32 : i32
    %6 = vector.broadcast %5 : i32 to vector<8x1xi32>
    %7 = arith.remsi %3, %6 : vector<8x1xi32>
    %c0_i32_1 = arith.constant 0 : i32
    %8 = vector.broadcast %c0_i32_1 : i32 to vector<8x1xi32>
    %9 = arith.cmpi ne, %7, %8 : vector<8x1xi32>
    %c0_i32_2 = arith.constant 0 : i32
    %10 = vector.broadcast %c0_i32_2 : i32 to vector<8x1xi32>
    %11 = arith.cmpi slt, %7, %10 : vector<8x1xi32>
    %c0_i32_3 = arith.constant 0 : i32
    %12 = arith.cmpi slt, %5, %c0_i32_3 : i32
    %13 = vector.broadcast %12 : i1 to vector<8x1xi1>
    %14 = vector.broadcast %13 : vector<8x1xi1> to vector<8x1xi1>
    %15 = arith.xori %11, %14 : vector<8x1xi1>
    %16 = arith.andi %15, %9 : vector<8x1xi1>
    %17 = vector.broadcast %5 : i32 to vector<8x1xi32>
    %18 = arith.addi %7, %17 : vector<8x1xi32>
    %19 = arith.select %16, %18, %7 : vector<8x1xi1>, vector<8x1xi32>
    %c0_i32_4 = arith.constant 0 : i32
    %20 = vector.broadcast %c0_i32_4 : i32 to vector<8x1xi32>
    %21 = arith.cmpi eq, %19, %20 : vector<8x1xi32>
    %c0_5 = arith.constant 0 : index
    %22 = memref.load %arg1[%c0_5] : memref<3xf32, #tpu.memory_space<smem>>
    %cst_6 = arith.constant 0.000000e+00 : f32
    %23 = vector.broadcast %cst_6 : f32 to vector<8x1xf32>
    %24 = vector.broadcast %22 : f32 to vector<8x1xf32>
    %25 = arith.select %21, %23, %24 : vector<8x1xi1>, vector<8x1xf32>
    %c3_i32 = arith.constant 3 : i32
    %26 = vector.broadcast %c3_i32 : i32 to vector<8x1xi32>
    %27 = arith.cmpi eq, %19, %26 : vector<8x1xi32>
    %c2 = arith.constant 2 : index
    %28 = memref.load %arg1[%c2] : memref<3xf32, #tpu.memory_space<smem>>
    %cst_7 = arith.constant 0.000000e+00 : f32
    %29 = vector.broadcast %cst_7 : f32 to vector<8x1xf32>
    %30 = vector.broadcast %28 : f32 to vector<8x1xf32>
    %31 = arith.select %27, %29, %30 : vector<8x1xi1>, vector<8x1xf32>
    %c1_i32_8 = arith.constant 1 : i32
    %32 = tpu.dynamic_rotate %2 by %c1_i32_8 dim 0 : vector<8x1xf32>, i32 -> vector<8x1xf32>
    %c7_i32 = arith.constant 7 : i32
    %33 = tpu.dynamic_rotate %2 by %c7_i32 dim 0 : vector<8x1xf32>, i32 -> vector<8x1xf32>
    %c1 = arith.constant 1 : index
    %34 = memref.load %arg1[%c1] : memref<3xf32, #tpu.memory_space<smem>>
    %35 = vector.broadcast %34 : f32 to vector<8x1xf32>
    %36 = arith.mulf %35, %2 : vector<8x1xf32>
    %37 = arith.mulf %25, %32 : vector<8x1xf32>
    %38 = arith.addf %36, %37 : vector<8x1xf32>
    %39 = arith.mulf %31, %33 : vector<8x1xf32>
    %40 = arith.addf %38, %39 : vector<8x1xf32>
    %41 = arith.negf %40 : vector<8x1xf32>
    %42 = math.exp %41 : vector<8x1xf32>
    %cst_9 = arith.constant 1.000000e+00 : f32
    %43 = vector.broadcast %cst_9 : f32 to vector<8x1xf32>
    %44 = arith.addf %43, %42 : vector<8x1xf32>
    %45 = arith.divf %43, %44 : vector<8x1xf32>
    %c0_10 = arith.constant 0 : index
    %c0_11 = arith.constant 0 : index
    %46 = vector.load %arg2[%c0_10, %c0_11] : memref<8x256xf32, #tpu.memory_space<vmem>>, vector<8x256xf32>
    %47 = vector.broadcast %45 : vector<8x1xf32> to vector<8x256xf32>
    %48 = arith.mulf %46, %47 : vector<8x256xf32>
    %c0_12 = arith.constant 0 : index
    %c0_13 = arith.constant 0 : index
    %49 = vector.load %arg3[%c0_12, %c0_13] : memref<8x256xf32, #tpu.memory_space<vmem>>, vector<8x256xf32>
    tpu.vector_store %arg3[%c0_12, %c0_13], %48 {strides = array<i32>} : memref<8x256xf32, #tpu.memory_space<vmem>>, vector<8x256xf32>,
    return
  }
  func.func @transform_0(%arg0: i32) -> i32 {
    %c0_i32 = arith.constant 0 : i32
    %c0_i32_0 = arith.constant 0 : i32
    return %c0_i32 : i32
  }
  func.func @transform_1(%arg0: i32) -> (i32, i32) {
    %c0_i32 = arith.constant 0 : i32
    %c0_i32_0 = arith.constant 0 : i32
    return %arg0, %c0_i32 : i32, i32
  }
  func.func @transform_2(%arg0: i32) -> (i32, i32) {
    %c0_i32 = arith.constant 0 : i32
    %c0_i32_0 = arith.constant 0 : i32
    return %arg0, %c0_i32 : i32, i32
  }
}

</mosaic_0001>

<llo_original>
// kernel: tpu_custom_call.1
$region0: #{tpu_custom_call.1}
  #allocation0 [shape = 'u32[]', space=smem, size = 0x4, offset = 0x4, fixed_abs, tag = 'smem constant byte address 0x4 - core index']
  #allocation1 [shape = 'u32[144,128]{1,0:T(1,128)}', space=vmem, size = 0x12000, scoped, tag = 'internal scratch']
  %s0 = inlined_call_operand.hbm [shape: f32[3], index: 0, kind: input, shape index: {}]
  %s1 = inlined_call_operand.hbm [shape: f32[8,256], index: 1, kind: input, shape index: {}]
  %s2 = inlined_call_operand.hbm [shape: f32[8,256], index: 2, kind: output, shape index: {}]
  %s3 = sld [smem:[#allocation0]]
  $region26: #{tpu_custom_call.1} parent=0
    _
  %s5 = ssub.s32 1, %s3
  %s6 = scalar_select 0, %s5, %s3
  $region1: #{tpu_custom_call.1} parent=0
    #allocation2 [shape = 'u8[512]{0}', space=smem, size = 0x200, scoped, tag = 'input window, operand 0, single buffered']
    #allocation3 [shape = 's32[1]{0}', space=sflag, size = 0x4, scoped, tag = 'scoped memory for tpu_custom_call.1']
    #allocation4 [shape = 's32[1]{0}', space=sflag, size = 0x4, scoped, tag = 'scoped memory for tpu_custom_call.1']
    #allocation5 [shape = 's32[1]{0}', space=sflag, size = 0x4, scoped, tag = 'scoped memory for tpu_custom_call.1']
    #allocation6 [shape = 'u8[8192]{0}', space=vmem, size = 0x2000, scoped, tag = 'input window, operand 1, single buffered']
    #allocation7 [shape = 'u8[8192]{0}', space=vmem, size = 0x2000, scoped, tag = 'output window, operand 0, single buffered']
    %7 = vsyncpa [#allocation5], 0
    %8 = vsyncpa [#allocation3], 0
    %9 = vsyncpa [#allocation4], 0
    // Predicated region
    $region2: #{tpu_custom_call.1} parent=1 // pred_check
      _
    $region3: #{tpu_custom_call.1} parent=1 // pred_check_branch
      %11 = sbr.rel (0) target = $region5
    $region4: #{tpu_custom_call.1} parent=1 // pred_region
      %s13 = ssub.s32 16, 16
      %14 = vsyncadd [#allocation5], %s13
      %17 = dma.hbm_to_smem %s0, 16, [#allocation2], [#allocation5]
    $region5: #{tpu_custom_call.1} parent=1 // pred_fallthru
      _
    // Predicated region
    $region6: #{tpu_custom_call.1} parent=1 // pred_check
      _
    $region7: #{tpu_custom_call.1} parent=1 // pred_check_branch
      %19 = sbr.rel (0) target = $region9
    $region8: #{tpu_custom_call.1} parent=1 // pred_region
      %s21 = ssub.s32 256, 256
      %22 = vsyncadd [#allocation3], %s21
      %s24 = sshll.u32 [#allocation6], 4
      %s25 = int_to_ptr.vmem [resolvable:$true] %s24
      %27 = dma.hbm_to_vmem [thread:$0]  %s1, 256, %s25, [#allocation3]
    $region9: #{tpu_custom_call.1} parent=1 // pred_fallthru
      _
    // Predicated region
    $region10: #{tpu_custom_call.1} parent=1 // pred_check
      _
    $region11: #{tpu_custom_call.1} parent=1 // pred_check_branch
      %29 = sbr.rel (0) target = $region13
    $region12: #{tpu_custom_call.1} parent=1 // pred_region
      %30 = dma.done [#allocation5], 16
    $region13: #{tpu_custom_call.1} parent=1 // pred_fallthru
      _
    // Predicated region
    $region14: #{tpu_custom_call.1} parent=1 // pred_check
      _
    $region15: #{tpu_custom_call.1} parent=1 // pred_check_branch
      %32 = sbr.rel (0) target = $region17
    $region16: #{tpu_custom_call.1} parent=1 // pred_region
      %33 = dma.done [#allocation3], 256
    $region17: #{tpu_custom_call.1} parent=1 // pred_fallthru
      _
    %34 = sfence
    %v35 = vld [vmem:[#allocation6] sm:$0xff]
    %v36 = vld [vmem:[#allocation6 + $0x8] sm:$0xff]
    %v37 = vadd.f32 %v35, %v36
    %38 = vadd.xlane.f32.xlu0 %v37
    %v39 = vpop.xlane.xlu0 %38
    %v40 = vlaneseq
    %v41 = vshrl.u32 %v40, 7
    %vm42 = vcmp.lt.s32.totalorder %v41, 0
    %v43 = vsub.s32 0, %v41
    %v44 = vsel %vm42, %v43, %v41
    %v45 = vshrl.u32 %v44, 2
    %v46 = vand.u32 %v44, 3
    %v47 = vsub.s32 0, %v46
    %v48 = vsel %vm42, %v47, %v46
    %vm49 = vcmp.ne.s32.totalorder %v48, 0
    %vm50 = vcmp.lt.s32.totalorder %v48, 0
    %vm51 = vmand %vm50, %vm49
    %v52 = vadd.s32 %v48, 4
    %v53 = vsel %vm51, %v52, %v48
    %vm54 = vcmp.eq.s32.totalorder %v53, 0
    %s55 = sld [smem:[#allocation2]]
    %v56 = vstv %s55
    %v57 = vsel %vm54, 0.0, %v56
    %vm58 = vcmp.eq.s32.totalorder %v53, 3
    %s59 = sld [smem:[#allocation2 + $0x2]]
    %v60 = vstv %s59
    %v61 = vsel %vm58, 0.0, %v60
    %v62 = vrot.slane %v39, 7
    %v63 = vrot.slane %v39, 1
    %s64 = sld [smem:[#allocation2 + $0x1]]
    %v65 = vstv %s64
    %v66 = vmul.f32 %v65, %v39
    %v67 = vmul.f32 %v57, %v62
    %v68 = vadd.f32 %v66, %v67
    %v69 = vmul.f32 %v61, %v63
    %v70 = vadd.f32 %v68, %v69
    %v71 = vxor.u32 %v70, 2147483648
    %v72 = vmul.f32 %v71, 1.442695
    %v73 = vpow.pop %v72
    %v74 = vadd.f32 %v73, 1.0
    %v75 = vrcp.pop %v74
    %v76 = vmul.f32 1.0, %v75
    %78 = vset.pattern.permute.xlu0 0
    %79 = vperm.xlu0 %78, %v76
    %v80 = vpop.permute.xlu0 %79
    %v82 = vmul.f32 %v35, %v80
    %v83 = vmul.f32 %v36, %v80
    %84 = vst [vmem:[#allocation7] sm:$0xff] %v82
    %85 = vst [vmem:[#allocation7 + $0x8] sm:$0xff] %v83
    // Predicated region
    $region18: #{tpu_custom_call.1} parent=1 // pred_check
      _
    $region19: #{tpu_custom_call.1} parent=1 // pred_check_branch
      %87 = sbr.rel (0) target = $region21
    $region20: #{tpu_custom_call.1} parent=1 // pred_region
      %s89 = ssub.s32 256, 256
      %90 = vsyncadd [#allocation4], %s89
      %s92 = sshll.u32 [#allocation7], 4
      %s93 = int_to_ptr.vmem [resolvable:$true] %s92
      %95 = dma.vmem_to_hbm [thread:$0]  %s93, 256, %s2, [#allocation4]
    $region21: #{tpu_custom_call.1} parent=1 // pred_fallthru
      _
    // Predicated region
    $region22: #{tpu_custom_call.1} parent=1 // pred_check
      _
    $region23: #{tpu_custom_call.1} parent=1 // pred_check_branch
      %97 = sbr.rel (0) target = $region25
    $region24: #{tpu_custom_call.1} parent=1 // pred_region
      %98 = dma.done [#allocation4], 256
    $region25: #{tpu_custom_call.1} parent=1 // pred_fallthru
      _
    %99 = vsyncpa [#allocation3], 1
    %100 = vsyncpa [#allocation4], 1
    %101 = vsyncpa [#allocation5], 1

</llo_original>
